<compile_context>
chip_gen: v5e
topology: v5e:2x2
jax: 0.10.0
libtpu: 0.0.40
codegen_flags: <defaults>
</compile_context>

<pallas_src>
import functools

import jax
import jax.numpy as jnp
from jax.experimental import pallas as pl
from jax.experimental.pallas import tpu as pltpu

EPS = 1e-5

_VMEM_LIMIT_CACHE = [None]


def _vmem_limit_bytes():
    """Generation-aware VMEM limit: ~75% of per-core capacity, capped at 96MiB."""
    if _VMEM_LIMIT_CACHE[0] is None:
        try:
            cap = int(pltpu.get_tpu_info().vmem_capacity_bytes)
        except Exception:
            cap = 64 * 1024 * 1024
        _VMEM_LIMIT_CACHE[0] = min(cap * 3 // 4, 96 * 1024 * 1024)
    return _VMEM_LIMIT_CACHE[0]


def _cparams(*semantics):
    return pltpu.CompilerParams(
        dimension_semantics=semantics,
        vmem_limit_bytes=_vmem_limit_bytes(),
    )


def _pick_tile(m, target):
    """Largest divisor of m that is <= target and sublane-aligned.

    Prefers multiples of 16 (bf16 packing), then multiples of 8 (f32 sublane
    constraint). Falls back to the full extent m (always a legal block shape)
    if no conforming divisor exists, so the (8,128) BlockSpec rule is never
    violated for awkward factorizations.
    """
    if m <= target:
        return m
    for align in (16, 8):
        d = target - (target % align)
        while d >= align:
            if m % d == 0:
                return d
            d -= align
    return m


# --------------------------------------------------------------------------
# Kernel 1: fused 1x1 conv  ->  relu?((x @ w) * bn_scale + bn_bias)
#           bf16 operands straight into the MXU, f32 epilogue, bf16 store.
# --------------------------------------------------------------------------
def _matmul_bn_act_kernel(x_ref, w_ref, s_ref, b_ref, o_ref, *, relu):
    acc = jnp.dot(x_ref[...], w_ref[...], preferred_element_type=jnp.float32)
    out = acc * s_ref[...] + b_ref[...]
    if relu:
        out = jnp.maximum(out, 0.0)
    o_ref[...] = out.astype(o_ref.dtype)


def matmul_bn_act(x, w_bf16, scale, bias, *, relu, out_dtype=jnp.bfloat16, tm=1024):
    M, K = x.shape
    _, Nc = w_bf16.shape
    tm = _pick_tile(M, tm)
    return pl.pallas_call(
        functools.partial(_matmul_bn_act_kernel, relu=relu),
        out_shape=jax.ShapeDtypeStruct((M, Nc), out_dtype),
        grid=(M // tm,),
        in_specs=[
            pl.BlockSpec((tm, K), lambda i: (i, 0)),
            pl.BlockSpec((K, Nc), lambda i: (0, 0)),
            pl.BlockSpec((1, Nc), lambda i: (0, 0)),
            pl.BlockSpec((1, Nc), lambda i: (0, 0)),
        ],
        out_specs=pl.BlockSpec((tm, Nc), lambda i: (i, 0)),
        compiler_params=_cparams("parallel"),
    )(x, w_bf16, scale, bias)


# --------------------------------------------------------------------------
# Kernel 2: 3x3 conv (pad=1, stride=1) + bn + relu.
#   - halo padding done in-kernel on a VMEM scratch (no XLA jnp.pad round trip)
#   - in-VMEM im2col: 9 taps concatenated along channels -> single deep-K dot
#   - activations stay bf16 end-to-end inside the kernel (no f32 upcast)
# --------------------------------------------------------------------------
def _conv3x3_bn_relu_kernel(x_ref, w_ref, s_ref, b_ref, o_ref, pad_ref, *, H, W):
    C = x_ref.shape[-1]
    # Zero the halo buffer and copy the unpadded block into its interior.
    # (Zero every step so the kernel is safe when the batch axis is sharded
    # across TensorCores and this core does not see program_id == 0.)
    pad_ref[...] = jnp.zeros_like(pad_ref)
    pad_ref[pl.ds(1, H), pl.ds(1, W), :] = x_ref[0]
    xp = pad_ref[...]                                   # (H+2, W+2, C) bf16

    # Tap-concat im2col: (H*W, 9*C) bf16, tap-major / channel-minor order
    # matching the (9*C, Co) weight layout prepared by the wrapper.
    patches = jnp.concatenate(
        [xp[dh:dh + H, dw:dw + W, :].reshape(H * W, C)
         for dh in range(3) for dw in range(3)],
        axis=-1,
    )
    acc = jnp.dot(patches, w_ref[...], preferred_element_type=jnp.float32)
    out = jnp.maximum(acc * s_ref[...] + b_ref[...], 0.0)
    o_ref[0] = out.astype(o_ref.dtype)


def conv3x3_bn_relu(x, w_flat, scale, bias, *, H, W, out_dtype=jnp.bfloat16):
    N, _, _, C = x.shape
    Co = w_flat.shape[-1]
    return pl.pallas_call(
        functools.partial(_conv3x3_bn_relu_kernel, H=H, W=W),
        out_shape=jax.ShapeDtypeStruct((N, H * W, Co), out_dtype),
        grid=(N,),
        in_specs=[
            pl.BlockSpec((1, H, W, C), lambda b: (b, 0, 0, 0)),
            pl.BlockSpec((9 * C, Co), lambda b: (0, 0)),
            pl.BlockSpec((1, Co), lambda b: (0, 0)),
            pl.BlockSpec((1, Co), lambda b: (0, 0)),
        ],
        out_specs=pl.BlockSpec((1, H * W, Co), lambda b: (b, 0, 0)),
        scratch_shapes=[pltpu.VMEM((H + 2, W + 2, C), x.dtype)],
        compiler_params=_cparams("parallel"),
    )(x, w_flat, scale, bias)


# --------------------------------------------------------------------------
# Kernel 3: 1x1 conv + bn (no relu) fused with per-batch channel sums (ECA pool)
# --------------------------------------------------------------------------
def _matmul_bn_chansum_kernel(x_ref, w_ref, s_ref, b_ref, o_ref, sum_ref):
    z = jnp.dot(x_ref[0], w_ref[...], preferred_element_type=jnp.float32)
    z = z * s_ref[...] + b_ref[...]
    o_ref[0] = z.astype(o_ref.dtype)

    @pl.when(pl.program_id(1) == 0)
    def _():
        sum_ref[...] = jnp.zeros_like(sum_ref)

    sum_ref[0] += jnp.sum(z, axis=0, keepdims=True)


def matmul_bn_chansum(x3, w_bf16, scale, bias, *, out_dtype=jnp.bfloat16, thw=1024):
    N, HW, K = x3.shape
    _, Co = w_bf16.shape
    thw = _pick_tile(HW, thw)
    out, csum = pl.pallas_call(
        _matmul_bn_chansum_kernel,
        out_shape=(jax.ShapeDtypeStruct((N, HW, Co), out_dtype),
                   jax.ShapeDtypeStruct((N, 1, Co), jnp.float32)),
        grid=(N, HW // thw),
        in_specs=[
            pl.BlockSpec((1, thw, K), lambda b, t: (b, t, 0)),
            pl.BlockSpec((K, Co), lambda b, t: (0, 0)),
            pl.BlockSpec((1, Co), lambda b, t: (0, 0)),
            pl.BlockSpec((1, Co), lambda b, t: (0, 0)),
        ],
        out_specs=(
            pl.BlockSpec((1, thw, Co), lambda b, t: (b, t, 0)),
            pl.BlockSpec((1, 1, Co), lambda b, t: (b, 0, 0)),
        ),
        # The channel-sum accumulator lives across the HW-tile axis -> arbitrary.
        compiler_params=_cparams("parallel", "arbitrary"),
    )(x3, w_bf16, scale, bias)
    return out, csum


# --------------------------------------------------------------------------
# Kernel 4: apply ECA gate + residual add + final ReLU (tiled over batch x HW).
#           Pure bandwidth: bf16 in, bf16 out, f32 math on the VPU.
# --------------------------------------------------------------------------
def _gate_residual_relu_kernel(x_ref, r_ref, g_ref, o_ref):
    v = x_ref[0].astype(jnp.float32) * g_ref[0] + r_ref[0].astype(jnp.float32)
    o_ref[0] = jnp.maximum(v, 0.0).astype(o_ref.dtype)


def gate_residual_relu(out3, residual, gate, *, out_dtype=jnp.bfloat16, thw=1024):
    N, HW, C = out3.shape
    thw = _pick_tile(HW, thw)
    return pl.pallas_call(
        _gate_residual_relu_kernel,
        out_shape=jax.ShapeDtypeStruct((N, HW, C), out_dtype),
        grid=(N, HW // thw),
        in_specs=[
            pl.BlockSpec((1, thw, C), lambda b, t: (b, t, 0)),
            pl.BlockSpec((1, thw, C), lambda b, t: (b, t, 0)),
            pl.BlockSpec((1, 1, C), lambda b, t: (b, 0, 0)),
        ],
        out_specs=pl.BlockSpec((1, thw, C), lambda b, t: (b, t, 0)),
        compiler_params=_cparams("parallel", "parallel"),
    )(out3, residual, gate)


# --------------------------------------------------------------------------
# Plain-JAX glue
# --------------------------------------------------------------------------
def fold_bn(bnp):
    s = bnp["gamma"] / jnp.sqrt(bnp["var"] + EPS)
    b = bnp["beta"] - bnp["mean"] * s
    return s[None, :], b[None, :]


def init_params(key, inplanes, planes, k_size=3):
    exp = 4
    ks = jax.random.split(key, 16)

    def bn(kg, kb, km, kv, c):
        return dict(
            gamma=jax.random.uniform(kg, (c,), jnp.float32, 0.5, 1.5),
            beta=0.1 * jax.random.normal(kb, (c,), jnp.float32),
            mean=0.1 * jax.random.normal(km, (c,), jnp.float32),
            var=jax.random.uniform(kv, (c,), jnp.float32, 0.5, 1.5),
        )

    return dict(
        w1=0.3 * jax.random.normal(ks[0], (planes, inplanes, 1, 1), jnp.float32),
        w2=0.3 * jax.random.normal(ks[1], (planes, planes, 3, 3), jnp.float32),
        w3=0.3 * jax.random.normal(ks[2], (planes * exp, planes, 1, 1), jnp.float32),
        wk=0.5 * jax.random.normal(ks[3], (1, 1, k_size), jnp.float32),
        bn1=bn(ks[4], ks[5], ks[6], ks[7], planes),
        bn2=bn(ks[8], ks[9], ks[10], ks[11], planes),
        bn3=bn(ks[12], ks[13], ks[14], ks[15], planes * exp),
    )


def eca_bottleneck_forward(x_nchw, params, stride=1):
    """ECABottleneck.forward with downsample=None (identity residual)."""
    # NCHW -> NHWC fused with a single bf16 cast (halves all later HBM reads).
    x = jnp.transpose(x_nchw, (0, 2, 3, 1)).astype(jnp.bfloat16)
    N, H, W, Cin = x.shape
    planes = params["w1"].shape[0]
    Cout = params["w3"].shape[0]
    assert stride == 1 and Cin == Cout, "downsample=None requires identity residual"

    s1, b1 = fold_bn(params["bn1"])
    s2, b2 = fold_bn(params["bn2"])
    s3, b3 = fold_bn(params["bn3"])

    # Weights cast once to bf16 for the MXU.
    w1m = params["w1"][:, :, 0, 0].T.astype(jnp.bfloat16)            # (Cin, planes)
    # (kh, kw, cin, cout) -> (9*cin, cout): tap-major / channel-minor, matching
    # the in-kernel patch concatenation order.
    w2f = jnp.transpose(params["w2"], (2, 3, 1, 0)).reshape(
        9 * planes, planes).astype(jnp.bfloat16)
    w3m = params["w3"][:, :, 0, 0].T.astype(jnp.bfloat16)            # (planes, Cout)

    # conv1 (1x1) + bn1 + relu  (flat row tiling; bf16 in, bf16 out)
    out1 = matmul_bn_act(x.reshape(N * H * W, Cin), w1m, s1, b1, relu=True)

    # conv2 (3x3, pad=1) + bn2 + relu: halo padding + im2col happen in VMEM,
    # so the unpadded out1 is the only HBM read (no XLA pad round trip).
    out2 = conv3x3_bn_relu(out1.reshape(N, H, W, planes), w2f, s2, b2, H=H, W=W)

    # conv3 (1x1) + bn3 (no relu), fused with per-batch channel sums for ECA.
    out3, csum = matmul_bn_chansum(out2, w3m, s3, b3)                # bf16, (N,1,Cout) f32

    # ECA gate: k=3 channel conv + sigmoid on the pooled (N, C) vector.
    # Tiny op kept as plain-JAX glue.
    wk = params["wk"][0, 0]
    mean = csum[:, 0, :] / float(H * W)
    mp = jnp.pad(mean, ((0, 0), (1, 1)))
    gate = jax.nn.sigmoid(wk[0] * mp[:, :-2] + wk[1] * mp[:, 1:-1] + wk[2] * mp[:, 2:])
    gate = gate.reshape(N, 1, Cout).astype(jnp.float32)

    # gate * out3 + residual, final relu  (bf16 residual, bf16 output)
    residual = x.reshape(N, H * W, Cin)
    out = gate_residual_relu(out3, residual, gate)                   # (N, HW, Cout) bf16
    out = jnp.transpose(out.reshape(N, H, W, Cout), (0, 3, 1, 2))    # back to NCHW
    return out.astype(jnp.float32)


# --------------------------------------------------------------------------
# Pure-JAX reference (lax.conv based) for verification
# --------------------------------------------------------------------------
def reference_forward(x_nchw, params, stride=1):
    x = jnp.transpose(x_nchw, (0, 2, 3, 1))
    dn = ("NHWC", "HWIO", "NHWC")

    def conv(v, w_oihw, strides, padding):
        w = jnp.transpose(w_oihw, (2, 3, 1, 0))
        return jax.lax.conv_general_dilated(
            v, w, strides, padding, dimension_numbers=dn,
            precision=jax.lax.Precision.HIGHEST)

    def bn(v, bnp):
        s = bnp["gamma"] / jnp.sqrt(bnp["var"] + EPS)
        return v * s + (bnp["beta"] - bnp["mean"] * s)

    out = jnp.maximum(bn(conv(x, params["w1"], (1, 1), "VALID"), params["bn1"]), 0.0)
    out = jnp.maximum(bn(conv(out, params["w2"], (stride, stride),
                              [(1, 1), (1, 1)]), params["bn2"]), 0.0)
    out = bn(conv(out, params["w3"], (1, 1), "VALID"), params["bn3"])
    # eca layer
    y = jnp.mean(out, axis=(1, 2))                                   # (N, C)
    wk = params["wk"][0, 0]
    yp = jnp.pad(y, ((0, 0), (1, 1)))
    yc = wk[0] * yp[:, :-2] + wk[1] * yp[:, 1:-1] + wk[2] * yp[:, 2:]
    gate = jax.nn.sigmoid(yc)[:, None, None, :]
    out = jnp.maximum(out * gate + x, 0.0)
    return jnp.transpose(out, (0, 3, 1, 2))


if __name__ == "__main__":
    key = jax.random.PRNGKey(0)
    kx, kp = jax.random.split(key)

    # Small shapes consistent with the module: inplanes == planes*4 so the
    # identity residual (downsample=None, stride=1) is valid.
    N, inplanes, planes, H, W = 2, 16, 4, 8, 8
    x = jax.random.normal(kx, (N, inplanes, H, W), jnp.float32)      # NCHW like PyTorch
    params = init_params(kp, inplanes, planes, k_size=3)

    out = jax.block_until_ready(eca_bottleneck_forward(x, params, stride=1))
    ref = jax.block_until_ready(reference_forward(x, params, stride=1))

    assert out.shape == (N, planes * 4, H, W), out.shape
    # bf16 MXU operands + bf16 intermediates vs f32 HIGHEST-precision reference.
    assert bool(jnp.allclose(out, ref, atol=5e-2, rtol=5e-2)), (
        f"max abs err = {float(jnp.max(jnp.abs(out - ref)))}")
    print("KERNEL_OK")
</pallas_src>

<mosaic_0001>
module attributes {stable_mosaic.version = 11 : i64} {
  func.func @_matmul_bn_act_kernel(%arg0: i32, %arg1: memref<128x16xbf16, #tpu.memory_space<vmem>>, %arg2: memref<16x4xbf16, #tpu.memory_space<vmem>>, %arg3: memref<1x4xf32, #tpu.memory_space<vmem>>, %arg4: memref<1x4xf32, #tpu.memory_space<vmem>>, %arg5: memref<128x4xbf16, #tpu.memory_space<vmem>>) attributes {dimension_semantics = [#tpu.dimension_semantics<parallel>], iteration_bounds = array<i64: 1>, scalar_prefetch = 0 : i64, scratch_operands = 0 : i64, tpu.core_type = #tpu.core_type<tc>, window_params = [{transform_indices = @transform_0, window_bounds = array<i64: 128, 16>}, {pipeline_mode = #tpu.pipeline_mode<synchronous>, transform_indices = @transform_1, window_bounds = array<i64: 16, 4>}, {pipeline_mode = #tpu.pipeline_mode<synchronous>, transform_indices = @transform_2, window_bounds = array<i64: 1, 4>}, {pipeline_mode = #tpu.pipeline_mode<synchronous>, transform_indices = @transform_3, window_bounds = array<i64: 1, 4>}, {transform_indices = @transform_4, window_bounds = array<i64: 128, 4>}]} {
    %c0 = arith.constant 0 : index
    %c0_0 = arith.constant 0 : index
    %0 = vector.load %arg1[%c0, %c0_0] : memref<128x16xbf16, #tpu.memory_space<vmem>>, vector<128x16xbf16>
    %c0_1 = arith.constant 0 : index
    %c0_2 = arith.constant 0 : index
    %1 = vector.load %arg2[%c0_1, %c0_2] : memref<16x4xbf16, #tpu.memory_space<vmem>>, vector<16x4xbf16>
    %cst = arith.constant dense<0.000000e+00> : vector<128x4xf32>
    %2 = tpu.matmul %0, %1, %cst {dimension_numbers = #tpu.dot_dimension_numbers<[1], [0], [0], [1], [0, 0, 1, 1], [], []>} : vector<128x16xbf16>, vector<16x4xbf16>, vector<128x4xf32> -> vector<128x4xf32>
    %c0_3 = arith.constant 0 : index
    %c0_4 = arith.constant 0 : index
    %3 = vector.load %arg3[%c0_3, %c0_4] : memref<1x4xf32, #tpu.memory_space<vmem>>, vector<1x4xf32>
    %4 = vector.broadcast %3 : vector<1x4xf32> to vector<128x4xf32>
    %5 = arith.mulf %2, %4 : vector<128x4xf32>
    %c0_5 = arith.constant 0 : index
    %c0_6 = arith.constant 0 : index
    %6 = vector.load %arg4[%c0_5, %c0_6] : memref<1x4xf32, #tpu.memory_space<vmem>>, vector<1x4xf32>
    %7 = vector.broadcast %6 : vector<1x4xf32> to vector<128x4xf32>
    %8 = arith.addf %5, %7 : vector<128x4xf32>
    %cst_7 = arith.constant 0.000000e+00 : f32
    %9 = vector.broadcast %cst_7 : f32 to vector<128x4xf32>
    %10 = arith.maximumf %8, %9 : vector<128x4xf32>
    %11 = arith.truncf %10 : vector<128x4xf32> to vector<128x4xbf16>
    %c0_8 = arith.constant 0 : index
    %c0_9 = arith.constant 0 : index
    %12 = vector.load %arg5[%c0_8, %c0_9] : memref<128x4xbf16, #tpu.memory_space<vmem>>, vector<128x4xbf16>
    tpu.vector_store %arg5[%c0_8, %c0_9], %11 {strides = array<i32>} : memref<128x4xbf16, #tpu.memory_space<vmem>>, vector<128x4xbf16>,
    return
  }
  func.func @transform_0(%arg0: i32) -> (i32, i32) {
    %c0_i32 = arith.constant 0 : i32
    %c0_i32_0 = arith.constant 0 : i32
    return %arg0, %c0_i32 : i32, i32
  }
  func.func @transform_1(%arg0: i32) -> (i32, i32) {
    %c0_i32 = arith.constant 0 : i32
    %c0_i32_0 = arith.constant 0 : i32
    %c0_i32_1 = arith.constant 0 : i32
    return %c0_i32, %c0_i32_0 : i32, i32
  }
  func.func @transform_2(%arg0: i32) -> (i32, i32) {
    %c0_i32 = arith.constant 0 : i32
    %c0_i32_0 = arith.constant 0 : i32
    %c0_i32_1 = arith.constant 0 : i32
    return %c0_i32, %c0_i32_0 : i32, i32
  }
  func.func @transform_3(%arg0: i32) -> (i32, i32) {
    %c0_i32 = arith.constant 0 : i32
    %c0_i32_0 = arith.constant 0 : i32
    %c0_i32_1 = arith.constant 0 : i32
    return %c0_i32, %c0_i32_0 : i32, i32
  }
  func.func @transform_4(%arg0: i32) -> (i32, i32) {
    %c0_i32 = arith.constant 0 : i32
    %c0_i32_0 = arith.constant 0 : i32
    return %arg0, %c0_i32 : i32, i32
  }
}

</mosaic_0001>

<llo_original>
// kernel: tpu_custom_call.1
$region0: #{tpu_custom_call.1}
  #allocation0 [shape = 'u32[]', space=smem, size = 0x4, offset = 0x4, fixed_abs, tag = 'smem constant byte address 0x4 - core index']
  #allocation1 [shape = 'u32[72,128]{1,0:T(1,128)}', space=vmem, size = 0x9000, scoped, tag = 'internal scratch']
  %s0 = inlined_call_operand.vmem [shape: bf16[128,16], index: 0, kind: input, shape index: {}]
  %s1 = inlined_call_operand.vmem [shape: bf16[16,4], index: 1, kind: input, shape index: {}]
  %s2 = inlined_call_operand.vmem [shape: f32[1,4], index: 2, kind: input, shape index: {}]
  %s3 = inlined_call_operand.vmem [shape: f32[1,4], index: 3, kind: input, shape index: {}]
  %s4 = inlined_call_operand.vmem [shape: bf16[128,4], index: 4, kind: output, shape index: {}]
  %s5 = sld [smem:[#allocation0]]
  $region26: #{tpu_custom_call.1} parent=0
    _
  %s7 = ssub.s32 1, %s5
  %s8 = scalar_select 0, %s7, %s5
  // Predicated region
  $region2: #{tpu_custom_call.1} parent=0 // pred_check
    _
  $region3: #{tpu_custom_call.1} parent=0 // pred_check_branch
    %10 = sbr.rel (0) target = $region5
  $region4: #{tpu_custom_call.1} parent=0 // pred_region
    _
  $region5: #{tpu_custom_call.1} parent=0 // pred_fallthru
    _
  // Predicated region
  $region6: #{tpu_custom_call.1} parent=0 // pred_check
    _
  $region7: #{tpu_custom_call.1} parent=0 // pred_check_branch
    %12 = sbr.rel (0) target = $region9
  $region8: #{tpu_custom_call.1} parent=0 // pred_region
    _
  $region9: #{tpu_custom_call.1} parent=0 // pred_fallthru
    _
  // Predicated region
  $region10: #{tpu_custom_call.1} parent=0 // pred_check
    _
  $region11: #{tpu_custom_call.1} parent=0 // pred_check_branch
    %14 = sbr.rel (0) target = $region13
  $region12: #{tpu_custom_call.1} parent=0 // pred_region
    _
  $region13: #{tpu_custom_call.1} parent=0 // pred_fallthru
    _
  // Predicated region
  $region14: #{tpu_custom_call.1} parent=0 // pred_check
    _
  $region15: #{tpu_custom_call.1} parent=0 // pred_check_branch
    %16 = sbr.rel (0) target = $region17
  $region16: #{tpu_custom_call.1} parent=0 // pred_region
    _
  $region17: #{tpu_custom_call.1} parent=0 // pred_fallthru
    _
  %v18 = vld [vmem:[%s0] sm:$0xf]
  %v19 = vld [vmem:[%s0 + $0x4] sm:$0xf]
  %v20 = vld [vmem:[%s0 + $0x8] sm:$0xf]
  %v21 = vld [vmem:[%s0 + $0xc] sm:$0xf]
  %v22 = vld [vmem:[%s0 + $0x10] sm:$0xf]
  %v23 = vld [vmem:[%s0 + $0x14] sm:$0xf]
  %v24 = vld [vmem:[%s0 + $0x18] sm:$0xf]
  %v25 = vld [vmem:[%s0 + $0x1c] sm:$0xf]
  %v26 = vld [vmem:[%s0 + $0x20] sm:$0xf]
  %v27 = vld [vmem:[%s0 + $0x24] sm:$0xf]
  %v28 = vld [vmem:[%s0 + $0x28] sm:$0xf]
  %v29 = vld [vmem:[%s0 + $0x2c] sm:$0xf]
  %v30 = vld [vmem:[%s0 + $0x30] sm:$0xf]
  %v31 = vld [vmem:[%s0 + $0x34] sm:$0xf]
  %v32 = vld [vmem:[%s0 + $0x38] sm:$0xf]
  %v33 = vld [vmem:[%s0 + $0x3c] sm:$0xf]
  %v34 = vld [vmem:[%s1] sm:$0xf]
  %v35 = vld [vmem:[%s1 + $0x4] sm:$0xf]
  %v52 = vunpack.c.l.b16 %v18
  %v53 = vunpack.c.l.b16 %v19
  %v54 = vunpack.c.l.b16 %v20
  %v55 = vunpack.c.l.b16 %v21
  %v56 = vunpack.c.l.b16 %v22
  %v57 = vunpack.c.l.b16 %v23
  %v58 = vunpack.c.l.b16 %v24
  %v59 = vunpack.c.l.b16 %v25
  %v60 = vunpack.c.l.b16 %v26
  %v61 = vunpack.c.l.b16 %v27
  %v62 = vunpack.c.l.b16 %v28
  %v63 = vunpack.c.l.b16 %v29
  %v64 = vunpack.c.l.b16 %v30
  %v65 = vunpack.c.l.b16 %v31
  %v66 = vunpack.c.l.b16 %v32
  %v67 = vunpack.c.l.b16 %v33
  %v68 = vpack.c.b16 %v53, %v52
  %v69 = vpack.c.b16 %v55, %v54
  %v70 = vpack.c.b16 %v57, %v56
  %v71 = vpack.c.b16 %v59, %v58
  %v72 = vpack.c.b16 %v61, %v60
  %v73 = vpack.c.b16 %v63, %v62
  %v74 = vpack.c.b16 %v65, %v64
  %v75 = vpack.c.b16 %v67, %v66
  %v78 = vunpack.c.l.b16 %v34
  %v79 = vunpack.c.l.b16 %v35
  %v80 = vpack.c.b16 %v79, %v78
  %vm82 = vcmask 130048
  %v84 = vsel %vm82, %v68, 0
  %v87 = vsel %vm82, %v69, 0
  %v90 = vsel %vm82, %v70, 0
  %v93 = vsel %vm82, %v71, 0
  %v96 = vsel %vm82, %v72, 0
  %v99 = vsel %vm82, %v73, 0
  %v102 = vsel %vm82, %v74, 0
  %v105 = vsel %vm82, %v75, 0
  %107 = vmatpush.bf16.msra.mxu0 0
  %108 = vmatpush.bf16.msra.mxu0 0
  %109 = vmatpush.bf16.msra.mxu0 0
  %110 = vmatpush.bf16.msra.mxu0 0
  %111 = vmatpush.bf16.msra.mxu0 0
  %112 = vmatpush.bf16.msra.mxu0 0
  %113 = vmatpush.bf16.msra.mxu0 0
  %114 = vmatpush.bf16.msra.mxu0 %v80
  %115 = vmatmul.bf16.gmra.mxu0 %v84
  %v116 = vpop.f32.mrf.mxu0
  %v117 = vadd.f32 0.0, %v116
  %v118 = vpop.f32.mrf.mxu0
  %v119 = vadd.f32 0.0, %v118
  %120 = vmatmul.bf16.gmra.mxu0 %v87
  %v121 = vpop.f32.mrf.mxu0
  %v122 = vadd.f32 0.0, %v121
  %v123 = vpop.f32.mrf.mxu0
  %v124 = vadd.f32 0.0, %v123
  %125 = vmatmul.bf16.gmra.mxu0 %v90
  %v126 = vpop.f32.mrf.mxu0
  %v127 = vadd.f32 0.0, %v126
  %v128 = vpop.f32.mrf.mxu0
  %v129 = vadd.f32 0.0, %v128
  %130 = vmatmul.bf16.gmra.mxu0 %v93
  %v131 = vpop.f32.mrf.mxu0
  %v132 = vadd.f32 0.0, %v131
  %v133 = vpop.f32.mrf.mxu0
  %v134 = vadd.f32 0.0, %v133
  %135 = vmatmul.bf16.gmra.mxu0 %v96
  %v136 = vpop.f32.mrf.mxu0
  %v137 = vadd.f32 0.0, %v136
  %v138 = vpop.f32.mrf.mxu0
  %v139 = vadd.f32 0.0, %v138
  %140 = vmatmul.bf16.gmra.mxu0 %v99
  %v141 = vpop.f32.mrf.mxu0
  %v142 = vadd.f32 0.0, %v141
  %v143 = vpop.f32.mrf.mxu0
  %v144 = vadd.f32 0.0, %v143
  %145 = vmatmul.bf16.gmra.mxu0 %v102
  %v146 = vpop.f32.mrf.mxu0
  %v147 = vadd.f32 0.0, %v146
  %v148 = vpop.f32.mrf.mxu0
  %v149 = vadd.f32 0.0, %v148
  %150 = vmatmul.bf16.gmra.mxu0 %v105
  %v151 = vpop.f32.mrf.mxu0
  %v152 = vadd.f32 0.0, %v151
  %v153 = vpop.f32.mrf.mxu0
  %v154 = vadd.f32 0.0, %v153
  %155 = vdwg.mxu0
  %v156 = vld [vmem:[%s2] sm:$0x1]
  %v158 = vperm.slane %v156, 0
  %v160 = vmul.f32 %v117, %v158
  %v161 = vmul.f32 %v119, %v158
  %v162 = vmul.f32 %v122, %v158
  %v163 = vmul.f32 %v124, %v158
  %v164 = vmul.f32 %v127, %v158
  %v165 = vmul.f32 %v129, %v158
  %v166 = vmul.f32 %v132, %v158
  %v167 = vmul.f32 %v134, %v158
  %v168 = vmul.f32 %v137, %v158
  %v169 = vmul.f32 %v139, %v158
  %v170 = vmul.f32 %v142, %v158
  %v171 = vmul.f32 %v144, %v158
  %v172 = vmul.f32 %v147, %v158
  %v173 = vmul.f32 %v149, %v158
  %v174 = vmul.f32 %v152, %v158
  %v175 = vmul.f32 %v154, %v158
  %v176 = vld [vmem:[%s3] sm:$0x1]
  %v178 = vperm.slane %v176, 0
  %v180 = vadd.f32 %v160, %v178
  %v181 = vadd.f32 %v161, %v178
  %v182 = vadd.f32 %v162, %v178
  %v183 = vadd.f32 %v163, %v178
  %v184 = vadd.f32 %v164, %v178
  %v185 = vadd.f32 %v165, %v178
  %v186 = vadd.f32 %v166, %v178
  %v187 = vadd.f32 %v167, %v178
  %v188 = vadd.f32 %v168, %v178
  %v189 = vadd.f32 %v169, %v178
  %v190 = vadd.f32 %v170, %v178
  %v191 = vadd.f32 %v171, %v178
  %v192 = vadd.f32 %v172, %v178
  %v193 = vadd.f32 %v173, %v178
  %v194 = vadd.f32 %v174, %v178
  %v195 = vadd.f32 %v175, %v178
  %v196 = vmax.f32 %v180, 0.0
  %v197 = vmax.f32 %v181, 0.0
  %v198 = vmax.f32 %v182, 0.0
  %v199 = vmax.f32 %v183, 0.0
  %v200 = vmax.f32 %v184, 0.0
  %v201 = vmax.f32 %v185, 0.0
  %v202 = vmax.f32 %v186, 0.0
  %v203 = vmax.f32 %v187, 0.0
  %v204 = vmax.f32 %v188, 0.0
  %v205 = vmax.f32 %v189, 0.0
  %v206 = vmax.f32 %v190, 0.0
  %v207 = vmax.f32 %v191, 0.0
  %v208 = vmax.f32 %v192, 0.0
  %v209 = vmax.f32 %v193, 0.0
  %v210 = vmax.f32 %v194, 0.0
  %v211 = vmax.f32 %v195, 0.0
  %v212 = vpack.c.bf16 %v196, %v196
  %v213 = vpack.c.bf16 %v197, %v197
  %v214 = vpack.c.bf16 %v198, %v198
  %v215 = vpack.c.bf16 %v199, %v199
  %v216 = vpack.c.bf16 %v200, %v200
  %v217 = vpack.c.bf16 %v201, %v201
  %v218 = vpack.c.bf16 %v202, %v202
  %v219 = vpack.c.bf16 %v203, %v203
  %v220 = vpack.c.bf16 %v204, %v204
  %v221 = vpack.c.bf16 %v205, %v205
  %v222 = vpack.c.bf16 %v206, %v206
  %v223 = vpack.c.bf16 %v207, %v207
  %v224 = vpack.c.bf16 %v208, %v208
  %v225 = vpack.c.bf16 %v209, %v209
  %v226 = vpack.c.bf16 %v210, %v210
  %v227 = vpack.c.bf16 %v211, %v211
  %vm228 = vcmask 27648
  %229 = vst.msk [vmem:[%s4] sm:$0xf] %vm228, %v212
  %230 = vst.msk [vmem:[%s4 + $0x4] sm:$0xf] %vm228, %v213
  %231 = vst.msk [vmem:[%s4 + $0x8] sm:$0xf] %vm228, %v214
  %232 = vst.msk [vmem:[%s4 + $0xc] sm:$0xf] %vm228, %v215
  %233 = vst.msk [vmem:[%s4 + $0x10] sm:$0xf] %vm228, %v216
  %234 = vst.msk [vmem:[%s4 + $0x14] sm:$0xf] %vm228, %v217
  %235 = vst.msk [vmem:[%s4 + $0x18] sm:$0xf] %vm228, %v218
  %236 = vst.msk [vmem:[%s4 + $0x1c] sm:$0xf] %vm228, %v219
  %237 = vst.msk [vmem:[%s4 + $0x20] sm:$0xf] %vm228, %v220
  %238 = vst.msk [vmem:[%s4 + $0x24] sm:$0xf] %vm228, %v221
  %239 = vst.msk [vmem:[%s4 + $0x28] sm:$0xf] %vm228, %v222
  %240 = vst.msk [vmem:[%s4 + $0x2c] sm:$0xf] %vm228, %v223
  %241 = vst.msk [vmem:[%s4 + $0x30] sm:$0xf] %vm228, %v224
  %242 = vst.msk [vmem:[%s4 + $0x34] sm:$0xf] %vm228, %v225
  %243 = vst.msk [vmem:[%s4 + $0x38] sm:$0xf] %vm228, %v226
  %244 = vst.msk [vmem:[%s4 + $0x3c] sm:$0xf] %vm228, %v227
  // Predicated region
  $region18: #{tpu_custom_call.1} parent=0 // pred_check
    _
  $region19: #{tpu_custom_call.1} parent=0 // pred_check_branch
    %246 = sbr.rel (0) target = $region21
  $region20: #{tpu_custom_call.1} parent=0 // pred_region
    _
  $region21: #{tpu_custom_call.1} parent=0 // pred_fallthru
    _
  // Predicated region
  $region22: #{tpu_custom_call.1} parent=0 // pred_check
    _
  $region23: #{tpu_custom_call.1} parent=0 // pred_check_branch
    %248 = sbr.rel (0) target = $region25
  $region24: #{tpu_custom_call.1} parent=0 // pred_region
    _
  $region25: #{tpu_custom_call.1} parent=0 // pred_fallthru
    _

</llo_original>
